<compile_context>
chip_gen: v6e
topology: v6e:2x2x1
jax: 0.10.0
libtpu: 0.0.40
codegen_flags: <defaults>
</compile_context>

<pallas_src>
import functools

import jax
import jax.numpy as jnp
from jax.experimental import pallas as pl
from jax.experimental.pallas import tpu as pltpu


LANES = 128  # vreg lane width


@functools.lru_cache(maxsize=None)
def _tpu_config():
    """Generation-aware budgets, keyed off physical VMEM capacity."""
    vmem_phys = None
    try:
        vmem_phys = int(pltpu.get_tpu_info().vmem_capacity_bytes)
    except Exception:
        vmem_phys = None
    if vmem_phys is not None and vmem_phys >= 100 * 1024 * 1024:
        # v5e / v6e: 128 MiB VMEM, single TensorCore.
        return {
            "vmem_limit": 96 * 1024 * 1024,
            "fast_budget": 72 * 1024 * 1024,  # in + out + f32 temp must fit here
            "block_rows": 2048,               # 1 MiB f32 streaming blocks
            "num_partials": 1,                # single TC -> one reduction chain
        }
    # v7x-class (64 MiB per-TC VMEM, 2 TensorCores) or unknown: conservative.
    return {
        "vmem_limit": 48 * 1024 * 1024,
        "fast_budget": 34 * 1024 * 1024,
        "block_rows": 4096,                   # 2 MiB blocks hide per-step overhead
        "num_partials": 2,                    # one reduction chain per TensorCore
    }


# ---------------------------------------------------------------------------
# Fast path: whole slab resident in VMEM, single HBM read of x.
# ---------------------------------------------------------------------------
def _fused_scale_kernel(x_ref, o_ref, *, lo, hi):
    x = x_ref[...]
    # min/max are exact in the native dtype -> no up-front f32 copy of the slab.
    mn = jnp.min(x).astype(jnp.float32)
    mx = jnp.max(x).astype(jnp.float32)
    a = (hi - lo) / (mx - mn)          # mx == mn -> inf/NaN, same as PyTorch ref
    b = lo - mn * a
    o_ref[...] = (x.astype(jnp.float32) * a + b).astype(o_ref.dtype)


# ---------------------------------------------------------------------------
# Pass 1: partial min / max per reduction chain.
#   grid = (num_partials, blocks_per_core); axis 0 "parallel" (megacore),
#   axis 1 "arbitrary" (serial accumulation into a vreg-sized scratch).
# ---------------------------------------------------------------------------
def _minmax_kernel(x_ref, min_ref, max_ref, acc_min, acc_max, *,
                   rows, blocks_per_core):
    c = pl.program_id(0)
    i = pl.program_id(1)
    block_rows = x_ref.shape[0]
    groups = block_rows // 8

    # Global block index this step covers.  The index_map clamps the actual
    # fetch to a valid block; steps whose unclamped range is fully out of
    # bounds are neutralized by the mask below.
    gi = c * blocks_per_core + i
    row0 = gi * block_rows

    x = x_ref[...].astype(jnp.float32)

    @pl.when(i == 0)
    def _():
        acc_min[...] = jnp.full((8, LANES), jnp.inf, jnp.float32)
        acc_max[...] = jnp.full((8, LANES), -jnp.inf, jnp.float32)

    full_block = row0 + block_rows <= rows

    @pl.when(full_block)
    def _():
        # Interior block: sublane-grouped reduce to a 2-vreg partial, then fold
        # into the vreg-sized accumulator.  Pure VPU; no full-block scratch
        # load/store traffic competing with the block DMA.
        acc_min[...] = jnp.minimum(
            acc_min[...], jnp.min(x.reshape(groups, 8, LANES), axis=0))
        acc_max[...] = jnp.maximum(
            acc_max[...], jnp.max(x.reshape(groups, 8, LANES), axis=0))

    @pl.when(jnp.logical_not(full_block))
    def _():
        # Ragged tail (or fully out-of-range duplicate) block: mask invalid rows.
        row_idx = jax.lax.broadcasted_iota(jnp.int32, (block_rows, LANES), 0) + row0
        valid = row_idx < rows
        xm = jnp.where(valid, x, jnp.inf)
        xM = jnp.where(valid, x, -jnp.inf)
        acc_min[...] = jnp.minimum(
            acc_min[...], jnp.min(xm.reshape(groups, 8, LANES), axis=0))
        acc_max[...] = jnp.maximum(
            acc_max[...], jnp.max(xM.reshape(groups, 8, LANES), axis=0))

    @pl.when(i == pl.num_programs(1) - 1)
    def _():
        # Single scalar (XLU) reduce per chain, only on the last step.
        min_ref[0, 0] = jnp.min(acc_min[...])
        max_ref[0, 0] = jnp.max(acc_max[...])


# ---------------------------------------------------------------------------
# Pass 2: streaming y = x * a + b.  The per-chain partial min/max arrive via
# SMEM and the affine coefficients are folded on the scalar path in-kernel.
# ---------------------------------------------------------------------------
def _rescale_kernel(mn_ref, mx_ref, x_ref, o_ref, *, lo, hi, num_partials):
    mn = mn_ref[0, 0]
    mx = mx_ref[0, 0]
    for p in range(1, num_partials):   # static unroll over the (1-2) partials
        mn = jnp.minimum(mn, mn_ref[p, 0])
        mx = jnp.maximum(mx, mx_ref[p, 0])
    a = (hi - lo) / (mx - mn)          # mx == mn -> inf, same as PyTorch
    b = lo - mn * a
    o_ref[...] = (x_ref[...].astype(jnp.float32) * a + b).astype(o_ref.dtype)


def scale2range_pallas(x, scale, *, force_two_pass=False):
    """Min-max rescale of the whole tensor `x` into [scale[0], scale[1]].

    Matches torch semantics: (x - x.min()) / (x.max() - x.min()) * (hi-lo) + lo.
    `scale` must be static Python numbers.  Floating inputs keep their dtype;
    integer inputs produce float32 (PyTorch true-division promotion).
    """
    lo, hi = float(scale[0]), float(scale[1])
    orig_shape = x.shape
    out_dtype = x.dtype if jnp.issubdtype(x.dtype, jnp.floating) else jnp.float32

    cfg = _tpu_config()
    vmem_limit = cfg["vmem_limit"]
    block_rows = cfg["block_rows"]
    num_partials = cfg["num_partials"]

    xf = x.reshape(-1)                      # free for contiguous inputs
    n = xf.shape[0]
    n_pad = (-n) % LANES
    if n_pad:
        # TODO(synk): ragged (non multiple-of-128) tensors still pay one padded
        # copy of x and one slice of y; folding the <128-element tail into the
        # kernels with a lane mask would bring them to the aligned roofline.
        xf = jnp.pad(xf, (0, n_pad), mode="edge")
    rows = xf.shape[0] // LANES
    x2d = xf.reshape(rows, LANES)           # lane-dense slab, free relayout

    elems = rows * LANES
    # dtype-aware fast-path VMEM estimate: native input + output + one f32 temp.
    vmem_need = (elems * jnp.dtype(x.dtype).itemsize
                 + elems * jnp.dtype(out_dtype).itemsize
                 + elems * 4)

    if vmem_need <= cfg["fast_budget"] and not force_two_pass:
        # ---- fast path: one fused kernel, whole slab in VMEM, 1 read + 1 write
        # TODO(synk): on v7x the ungridded fast path issues DMAs from a single
        # TensorCore; if that can't saturate HBM the crossover should be tuned
        # empirically rather than by the fixed byte budget.
        y2d = pl.pallas_call(
            functools.partial(_fused_scale_kernel, lo=lo, hi=hi),
            out_shape=jax.ShapeDtypeStruct((rows, LANES), out_dtype),
            compiler_params=pltpu.CompilerParams(vmem_limit_bytes=vmem_limit),
        )(x2d)
    else:
        total_blocks = pl.cdiv(rows, block_rows)
        bpc = pl.cdiv(total_blocks, num_partials)

        # ---- pass 1: partial min / max (one chain per TensorCore) -----------
        mn_p, mx_p = pl.pallas_call(
            functools.partial(_minmax_kernel, rows=rows, blocks_per_core=bpc),
            out_shape=(jax.ShapeDtypeStruct((num_partials, 1), jnp.float32),
                       jax.ShapeDtypeStruct((num_partials, 1), jnp.float32)),
            grid_spec=pltpu.PrefetchScalarGridSpec(
                num_scalar_prefetch=0,
                grid=(num_partials, bpc),
                in_specs=[pl.BlockSpec(
                    (block_rows, LANES),
                    lambda c, i: (jnp.minimum(c * bpc + i, total_blocks - 1), 0))],
                out_specs=[pl.BlockSpec((1, 1), lambda c, i: (c, 0)),
                           pl.BlockSpec((1, 1), lambda c, i: (c, 0))],
                scratch_shapes=[pltpu.VMEM((8, LANES), jnp.float32),
                                pltpu.VMEM((8, LANES), jnp.float32)],
            ),
            compiler_params=pltpu.CompilerParams(
                dimension_semantics=("parallel", "arbitrary"),
                vmem_limit_bytes=vmem_limit),
        )(x2d)

        # ---- pass 2: elementwise rescale; partials folded in-kernel via SMEM.
        # NOTE: add input_output_aliases={2: 0} here if the caller donates x.
        y2d = pl.pallas_call(
            functools.partial(_rescale_kernel, lo=lo, hi=hi,
                              num_partials=num_partials),
            out_shape=jax.ShapeDtypeStruct((rows, LANES), out_dtype),
            grid_spec=pltpu.PrefetchScalarGridSpec(
                num_scalar_prefetch=0,
                grid=(total_blocks,),
                in_specs=[pl.BlockSpec(memory_space=pltpu.MemorySpace.SMEM),
                          pl.BlockSpec(memory_space=pltpu.MemorySpace.SMEM),
                          pl.BlockSpec((block_rows, LANES), lambda i: (i, 0))],
                out_specs=pl.BlockSpec((block_rows, LANES), lambda i: (i, 0)),
            ),
            compiler_params=pltpu.CompilerParams(
                dimension_semantics=("parallel",),
                vmem_limit_bytes=vmem_limit),
        )(mn_p, mx_p, x2d)

    y = y2d.reshape(-1)
    if n_pad:
        y = y[:n]
    return y.reshape(orig_shape)


class ScalePallas:
    """JAX/Pallas equivalent of the PyTorch `Scale` module."""

    def __init__(self, scale):
        self.scale = scale

    def __call__(self, x):
        return scale2range_pallas(x, self.scale)

    def __repr__(self):
        return f"ScalePallas(scale={self.scale})"


if __name__ == "__main__":
    key = jax.random.PRNGKey(0)
    scale = (-1.0, 1.0)
    mod = ScalePallas(scale)

    def ref_fn(x):
        return (x - x.min()) / (x.max() - x.min()) * (scale[1] - scale[0]) + scale[0]

    k1, k2, k3 = jax.random.split(key, 3)

    # Small NCHW batch -> fast path (whole slab resident in VMEM).
    x1 = jax.random.normal(k1, (2, 4, 16, 16), dtype=jnp.float32) * 3.0 + 1.5
    y1 = jax.block_until_ready(mod(x1))
    assert y1.shape == x1.shape and y1.dtype == x1.dtype
    assert jnp.allclose(y1, ref_fn(x1), atol=1e-5, rtol=1e-5)

    # Ragged size (not a multiple of 128), forced through the tiled two-pass
    # path: exercises partial-block masking, the vreg-sized accumulators,
    # split reduction chains, and the SMEM-fed in-kernel affine.
    x2 = jax.random.normal(k2, (3, 5, 40, 40), dtype=jnp.float32) * 2.0 - 0.7
    y2 = jax.block_until_ready(scale2range_pallas(x2, scale, force_two_pass=True))
    assert y2.shape == x2.shape and y2.dtype == x2.dtype
    assert jnp.allclose(y2, ref_fn(x2), atol=1e-5, rtol=1e-5)

    # bf16 fast path: native-dtype min/max, dtype preserved on output.
    x3 = (jax.random.normal(k3, (2, 8, 32, 32), dtype=jnp.float32) * 1.7
          ).astype(jnp.bfloat16)
    y3 = jax.block_until_ready(mod(x3))
    assert y3.shape == x3.shape and y3.dtype == jnp.bfloat16
    ref3 = ref_fn(x3.astype(jnp.float32))
    assert jnp.allclose(y3.astype(jnp.float32), ref3, atol=3e-2)

    print("KERNEL_OK")
</pallas_src>

<mosaic_0001>
module attributes {stable_mosaic.version = 11 : i64} {
  func.func @_fused_scale_kernel(%arg0: memref<16x128xf32, #tpu.memory_space<vmem>>, %arg1: memref<16x128xf32, #tpu.memory_space<vmem>>) attributes {dimension_semantics = [], scalar_prefetch = 0 : i64, scratch_operands = 0 : i64, tpu.core_type = #tpu.core_type<tc>} {
    %c0 = arith.constant 0 : index
    %c0_0 = arith.constant 0 : index
    %0 = vector.load %arg0[%c0, %c0_0] : memref<16x128xf32, #tpu.memory_space<vmem>>, vector<16x128xf32>
    %1 = vector.shape_cast %0 : vector<16x128xf32> to vector<1x16x128xf32>
    %cst = arith.constant dense<0x7F800000> : vector<1xf32>
    %2 = vector.multi_reduction <minimumf>, %1, %cst [1, 2] : vector<1x16x128xf32> to vector<1xf32>
    %3 = vector.shape_cast %2 : vector<1xf32> to vector<1x1x1xf32>
    %4 = vector.extract %3[0, 0, 0] : f32 from vector<1x1x1xf32>
    %5 = vector.shape_cast %0 : vector<16x128xf32> to vector<1x16x128xf32>
    %cst_1 = arith.constant dense<0xFF800000> : vector<1xf32>
    %6 = vector.multi_reduction <maximumf>, %5, %cst_1 [1, 2] : vector<1x16x128xf32> to vector<1xf32>
    %7 = vector.shape_cast %6 : vector<1xf32> to vector<1x1x1xf32>
    %8 = vector.extract %7[0, 0, 0] : f32 from vector<1x1x1xf32>
    %9 = arith.subf %8, %4 : f32
    %cst_2 = arith.constant 2.000000e+00 : f32
    %10 = arith.divf %cst_2, %9 : f32
    %11 = arith.mulf %4, %10 : f32
    %cst_3 = arith.constant -1.000000e+00 : f32
    %12 = arith.subf %cst_3, %11 : f32
    %13 = vector.broadcast %10 : f32 to vector<16x128xf32>
    %14 = arith.mulf %0, %13 : vector<16x128xf32>
    %15 = vector.broadcast %12 : f32 to vector<16x128xf32>
    %16 = arith.addf %14, %15 : vector<16x128xf32>
    %c0_4 = arith.constant 0 : index
    %c0_5 = arith.constant 0 : index
    %17 = vector.load %arg1[%c0_4, %c0_5] : memref<16x128xf32, #tpu.memory_space<vmem>>, vector<16x128xf32>
    tpu.vector_store %arg1[%c0_4, %c0_5], %16 {strides = array<i32>} : memref<16x128xf32, #tpu.memory_space<vmem>>, vector<16x128xf32>,
    return
  }
}

</mosaic_0001>

<llo_original>
// kernel: tpu_custom_call.1
$region0: #{tpu_custom_call.1}
  #allocation0 [shape = 'u32[]', space=smem, size = 0x4, offset = 0x4, fixed_abs, tag = 'smem constant byte address 0x4 - core index']
  #allocation1 [shape = 'u32[144,128]{1,0:T(1,128)}', space=vmem, size = 0x12000, scoped, tag = 'internal scratch']
  %s0 = inlined_call_operand.hbm [shape: f32[16,128], index: 0, kind: input, shape index: {}]
  %s1 = inlined_call_operand.hbm [shape: f32[16,128], index: 1, kind: output, shape index: {}]
  %s2 = sld [smem:[#allocation0]]
  $region18: #{tpu_custom_call.1} parent=0
    _
  %s4 = ssub.s32 1, %s2
  %s5 = scalar_select 0, %s4, %s2
  $region1: #{tpu_custom_call.1} parent=0
    #allocation2 [shape = 'u8[8192]{0}', space=vmem, size = 0x2000, scoped, tag = 'input window, operand 0, single buffered']
    #allocation3 [shape = 's32[1]{0}', space=sflag, size = 0x4, scoped, tag = 'scoped memory for tpu_custom_call.1']
    #allocation4 [shape = 's32[1]{0}', space=sflag, size = 0x4, scoped, tag = 'scoped memory for tpu_custom_call.1']
    #allocation5 [shape = 'u8[8192]{0}', space=vmem, size = 0x2000, scoped, tag = 'output window, operand 0, single buffered']
    %6 = vsyncpa [#allocation3], 0
    %7 = vsyncpa [#allocation4], 0
    // Predicated region
    $region2: #{tpu_custom_call.1} parent=1 // pred_check
      _
    $region3: #{tpu_custom_call.1} parent=1 // pred_check_branch
      %9 = sbr.rel (0) target = $region5
    $region4: #{tpu_custom_call.1} parent=1 // pred_region
      %s11 = ssub.s32 256, 256
      %12 = vsyncadd [#allocation3], %s11
      %s13 = sshll.u32 [#allocation2], 4
      %s14 = int_to_ptr.vmem [resolvable:$true] %s13
      %19 = dma.hbm_to_vmem [thread:$0]  %s0, 256, %s14, [#allocation3], 128, 128, 8
    $region5: #{tpu_custom_call.1} parent=1 // pred_fallthru
      _
    // Predicated region
    $region6: #{tpu_custom_call.1} parent=1 // pred_check
      _
    $region7: #{tpu_custom_call.1} parent=1 // pred_check_branch
      %21 = sbr.rel (0) target = $region9
    $region8: #{tpu_custom_call.1} parent=1 // pred_region
      %22 = dma.done [#allocation3], 256
    $region9: #{tpu_custom_call.1} parent=1 // pred_fallthru
      _
    %v23 = vld [vmem:[#allocation2] sm:$0xff]
    %v24 = vld [vmem:[#allocation2 + $0x8] sm:$0xff]
    %v25 = vmin.f32 %v23, %v24
    %26 = vmin.xlane.f32.xlu0 %v25
    %v27 = vpop.xlane.xlu0 %26
    %v28 = vrot.slane %v27, 4
    %v29 = vmin.f32 %v27, %v28
    %v30 = vrot.slane %v29, 2
    %v31 = vmin.f32 %v29, %v30
    %v32 = vrot.slane %v31, 1
    %v33 = vmin.f32 %v31, %v32
    %s34 = vtos %v33
    %v35 = vmax.f32 %v23, %v24
    %36 = vmax.xlane.f32.xlu0 %v35
    %v37 = vpop.xlane.xlu0 %36
    %v38 = vrot.slane %v37, 4
    %v39 = vmax.f32 %v37, %v38
    %v40 = vrot.slane %v39, 2
    %v41 = vmax.f32 %v39, %v40
    %v42 = vrot.slane %v41, 1
    %v43 = vmax.f32 %v41, %v42
    %s44 = vtos %v43
    %s45 = ssub.f32 %s44, %s34
    %v46 = vstv %s45
    %v47 = vrcp.pop %v46
    %s48 = vtos %v47
    %s49 = smul.f32 2.0, %s48
    %s50 = smul.f32 %s34, %s49
    %s51 = ssub.f32 -1.0, %s50
    %v52 = vstv %s49
    %v53 = vmul.f32 %v23, %v52
    %v54 = vmul.f32 %v24, %v52
    %v55 = vstv %s51
    %v56 = vadd.f32 %v53, %v55
    %v57 = vadd.f32 %v54, %v55
    %58 = vst [vmem:[#allocation5] sm:$0xff] %v56
    %59 = vst [vmem:[#allocation5 + $0x8] sm:$0xff] %v57
    // Predicated region
    $region10: #{tpu_custom_call.1} parent=1 // pred_check
      _
    $region11: #{tpu_custom_call.1} parent=1 // pred_check_branch
      %61 = sbr.rel (0) target = $region13
    $region12: #{tpu_custom_call.1} parent=1 // pred_region
      %s63 = ssub.s32 256, 256
      %64 = vsyncadd [#allocation4], %s63
      %s65 = sshll.u32 [#allocation5], 4
      %s66 = int_to_ptr.vmem [resolvable:$true] %s65
      %71 = dma.vmem_to_hbm [thread:$0]  %s66, 256, %s1, [#allocation4], 128, 128, 8
    $region13: #{tpu_custom_call.1} parent=1 // pred_fallthru
      _
    // Predicated region
    $region14: #{tpu_custom_call.1} parent=1 // pred_check
      _
    $region15: #{tpu_custom_call.1} parent=1 // pred_check_branch
      %73 = sbr.rel (0) target = $region17
    $region16: #{tpu_custom_call.1} parent=1 // pred_region
      %74 = dma.done [#allocation4], 256
    $region17: #{tpu_custom_call.1} parent=1 // pred_fallthru
      _
    %75 = vsyncpa [#allocation3], 1
    %76 = vsyncpa [#allocation4], 1

</llo_original>
